<compile_context>
chip_gen: v5e
topology: v5e:2x2
jax: 0.10.0
libtpu: 0.0.40
codegen_flags: <defaults>
</compile_context>

<pallas_src>
import numpy as np

import jax
import jax.numpy as jnp
from jax.experimental import pallas as pl
from jax.experimental.pallas import tpu as pltpu

INPUT_DIM = 41
HIDDEN_DIM = 64
LANE = 128     # TPU lane width
SUBLANE = 8    # TPU sublane width for 32-bit dtypes


def _round_up(n, m):
    return ((n + m - 1) // m) * m


def _itemsize(dtype):
    return np.dtype(dtype).itemsize


def _sublane_multiple(dtype):
    # Sub-32-bit dtypes pack along sublanes: f32 -> 8, bf16 -> 16, int8 -> 32.
    return SUBLANE * max(1, 4 // max(_itemsize(dtype), 1))


def _mlp_kernel(x_ref, w1_ref, b1_ref, w2_ref, b2_ref, o_ref):
    # fc1 + ReLU: MXU matmul with f32 accumulation; bias add / ReLU in f32
    # on the VPU.
    x = x_ref[...]
    if x.dtype != w1_ref.dtype:          # in-kernel cast only (no extra HBM pass)
        x = x.astype(w1_ref.dtype)
    h = jnp.dot(x, w1_ref[...], preferred_element_type=jnp.float32)
    h = jnp.maximum(h + b1_ref[...], 0.0)
    # fc2 + ReLU: cast h to the weight dtype so a bf16 weight path uses the
    # MXU's native bf16 input format; accumulation stays f32.
    o = jnp.dot(h.astype(w2_ref.dtype), w2_ref[...],
                preferred_element_type=jnp.float32)
    o_ref[...] = jnp.maximum(o + b2_ref[...], 0.0).astype(o_ref.dtype)


def feature_extractor(x, w1, b1, w2, b2, *, block_b=4096, param_dtype=None,
                      out_dtype=jnp.float32, buffer_count=None):
    """x: (B, input_dim); weights stored (in, out). Returns (B, hidden)."""
    B, in_dim = x.shape
    hidden = w1.shape[1]

    # Optional compact weight storage (tiny, one-time, stays VMEM-resident).
    if param_dtype is not None:
        w1 = w1.astype(param_dtype)
        w2 = w2.astype(param_dtype)

    # Biases as (1, H) f32 rows so they broadcast cleanly in-kernel.
    b1_2d = b1.reshape(1, hidden).astype(jnp.float32)
    b2_2d = b2.reshape(1, hidden).astype(jnp.float32)

    # ---- batch tiling ----------------------------------------------------
    # Sublane multiple must respect dtype packing of the batch-tiled operands.
    sub = max(_sublane_multiple(x.dtype), _sublane_multiple(out_dtype))
    # Aim for >= 2 grid steps whenever B allows so the "parallel" batch axis
    # can shard across v7x's two TensorCores; harmless on v5e/v6e.
    tb = min(block_b, _round_up(pl.cdiv(B, 2), sub))
    tb = _round_up(tb, sub)
    if tb >= B:
        tb = B          # single step; block == full array dim is always legal
    grid = (pl.cdiv(B, tb),)

    # ---- cost estimate & compiler params -----------------------------------
    x_bytes = B * in_dim * _itemsize(x.dtype)
    o_bytes = B * hidden * _itemsize(out_dtype)
    w_bytes = ((in_dim * hidden + hidden * hidden) * _itemsize(w1.dtype)
               + 2 * hidden * 4)
    cost = pl.CostEstimate(
        flops=2 * B * (in_dim * hidden + hidden * hidden),
        transcendentals=0,
        bytes_accessed=x_bytes + o_bytes + w_bytes,
    )

    n_buf = 2 if buffer_count is None else buffer_count
    vmem_need = (tb * _round_up(in_dim, LANE) * _itemsize(x.dtype)
                 + tb * _round_up(hidden, LANE) * _itemsize(out_dtype)) * n_buf \
                + 4 * w_bytes + (1 << 20)
    cp_kwargs = dict(dimension_semantics=("parallel",))
    if vmem_need > (14 << 20):     # only kicks in for very large block_b (v5e)
        cp_kwargs["vmem_limit_bytes"] = int(min(vmem_need + (4 << 20), 48 << 20))

    # ---- block specs -------------------------------------------------------
    def _stream_spec(shape, index_map):
        # Optional deeper pipelining on the streaming (batch-tiled) operands.
        if buffer_count is not None and hasattr(pl, "Buffered"):
            return pl.BlockSpec(shape, index_map,
                                pipeline_mode=pl.Buffered(buffer_count))
        return pl.BlockSpec(shape, index_map)

    const2d = lambda arr: pl.BlockSpec(arr.shape, lambda i: (0, 0))

    out = pl.pallas_call(
        _mlp_kernel,
        out_shape=jax.ShapeDtypeStruct((B, hidden), out_dtype),
        grid=grid,
        in_specs=[
            _stream_spec((tb, in_dim), lambda i: (i, 0)),   # x: batch-tiled
            const2d(w1),                                    # VMEM-resident
            const2d(b1_2d),
            const2d(w2),
            const2d(b2_2d),
        ],
        out_specs=_stream_spec((tb, hidden), lambda i: (i, 0)),
        compiler_params=pltpu.CompilerParams(**cp_kwargs),
        cost_estimate=cost,
    )(x, w1, b1_2d, w2, b2_2d)
    return out


def init_params(key, input_dim=INPUT_DIM, hidden_dim=HIDDEN_DIM):
    """Deterministic init mimicking nn.Linear's uniform(-1/sqrt(fan_in), ...)."""
    k1, k2, k3, k4 = jax.random.split(key, 4)
    bound1 = 1.0 / jnp.sqrt(input_dim)
    bound2 = 1.0 / jnp.sqrt(hidden_dim)
    # Stored already-transposed: (in, out) so forward is x @ W.
    w1 = jax.random.uniform(k1, (input_dim, hidden_dim), jnp.float32, -bound1, bound1)
    b1 = jax.random.uniform(k2, (hidden_dim,), jnp.float32, -bound1, bound1)
    w2 = jax.random.uniform(k3, (hidden_dim, hidden_dim), jnp.float32, -bound2, bound2)
    b2 = jax.random.uniform(k4, (hidden_dim,), jnp.float32, -bound2, bound2)
    return w1, b1, w2, b2


def feature_extractor_ref(x, w1, b1, w2, b2):
    h = jnp.maximum(x @ w1 + b1, 0.0)
    return jnp.maximum(h @ w2 + b2, 0.0)


if __name__ == "__main__":
    key = jax.random.PRNGKey(0)
    kx1, kx2, kx3, kp = jax.random.split(key, 4)
    w1, b1, w2, b2 = init_params(kp)

    # Small batch: single grid step, block == full array dims.
    B = 8
    x = jax.random.normal(kx1, (B, INPUT_DIM), jnp.float32)
    out = jax.block_until_ready(feature_extractor(x, w1, b1, w2, b2))
    ref = feature_extractor_ref(x, w1, b1, w2, b2)
    assert out.shape == (B, HIDDEN_DIM) and out.dtype == jnp.float32
    assert jnp.allclose(out, ref, atol=1e-5, rtol=1e-5)

    # Ragged batch: default block_b -> 2 grid steps (v7x megacore split) with
    # a partial last tile; also re-run with a small block_b (3-step grid).
    B2 = 300
    x2 = jax.random.normal(kx2, (B2, INPUT_DIM), jnp.float32)
    ref2 = feature_extractor_ref(x2, w1, b1, w2, b2)
    out2 = jax.block_until_ready(feature_extractor(x2, w1, b1, w2, b2))
    assert out2.shape == (B2, HIDDEN_DIM)
    assert jnp.allclose(out2, ref2, atol=1e-5, rtol=1e-5)
    out2b = jax.block_until_ready(
        feature_extractor(x2, w1, b1, w2, b2, block_b=128))
    assert jnp.allclose(out2b, ref2, atol=1e-5, rtol=1e-5)

    # Batch smaller than a sublane (block == full array dim path).
    B3 = 5
    x3 = jax.random.normal(kx3, (B3, INPUT_DIM), jnp.float32)
    out3 = jax.block_until_ready(feature_extractor(x3, w1, b1, w2, b2))
    ref3 = feature_extractor_ref(x3, w1, b1, w2, b2)
    assert jnp.allclose(out3, ref3, atol=1e-5, rtol=1e-5)

    # bf16 weights + bf16 output (halves the output HBM stream); x stays f32
    # in HBM and is only cast in-kernel. Looser tolerance expected.
    out_bf16 = jax.block_until_ready(
        feature_extractor(x, w1, b1, w2, b2,
                          param_dtype=jnp.bfloat16, out_dtype=jnp.bfloat16))
    assert out_bf16.shape == (B, HIDDEN_DIM) and out_bf16.dtype == jnp.bfloat16
    assert jnp.allclose(out_bf16.astype(jnp.float32), ref, atol=5e-2, rtol=5e-2)

    print("KERNEL_OK")
</pallas_src>

<mosaic_0001>
module attributes {stable_mosaic.version = 11 : i64} {
  func.func @_mlp_kernel(%arg0: i32, %arg1: memref<8x41xf32, #tpu.memory_space<vmem>>, %arg2: memref<41x64xf32, #tpu.memory_space<vmem>>, %arg3: memref<1x64xf32, #tpu.memory_space<vmem>>, %arg4: memref<64x64xf32, #tpu.memory_space<vmem>>, %arg5: memref<1x64xf32, #tpu.memory_space<vmem>>, %arg6: memref<8x64xf32, #tpu.memory_space<vmem>>) attributes {dimension_semantics = [#tpu.dimension_semantics<parallel>], iteration_bounds = array<i64: 1>, scalar_prefetch = 0 : i64, scratch_operands = 0 : i64, tpu.core_type = #tpu.core_type<tc>, window_params = [{transform_indices = @transform_0, window_bounds = array<i64: 8, 41>}, {pipeline_mode = #tpu.pipeline_mode<synchronous>, transform_indices = @transform_1, window_bounds = array<i64: 41, 64>}, {pipeline_mode = #tpu.pipeline_mode<synchronous>, transform_indices = @transform_2, window_bounds = array<i64: 1, 64>}, {pipeline_mode = #tpu.pipeline_mode<synchronous>, transform_indices = @transform_3, window_bounds = array<i64: 64, 64>}, {pipeline_mode = #tpu.pipeline_mode<synchronous>, transform_indices = @transform_4, window_bounds = array<i64: 1, 64>}, {transform_indices = @transform_5, window_bounds = array<i64: 8, 64>}]} {
    %c0 = arith.constant 0 : index
    %c0_0 = arith.constant 0 : index
    %0 = vector.load %arg1[%c0, %c0_0] : memref<8x41xf32, #tpu.memory_space<vmem>>, vector<8x41xf32>
    %c0_1 = arith.constant 0 : index
    %c0_2 = arith.constant 0 : index
    %1 = vector.load %arg2[%c0_1, %c0_2] : memref<41x64xf32, #tpu.memory_space<vmem>>, vector<41x64xf32>
    %cst = arith.constant dense<0.000000e+00> : vector<8x64xf32>
    %2 = tpu.matmul %0, %1, %cst {dimension_numbers = #tpu.dot_dimension_numbers<[1], [0], [0], [1], [0, 0, 1, 1], [], []>} : vector<8x41xf32>, vector<41x64xf32>, vector<8x64xf32> -> vector<8x64xf32>
    %c0_3 = arith.constant 0 : index
    %c0_4 = arith.constant 0 : index
    %3 = vector.load %arg3[%c0_3, %c0_4] : memref<1x64xf32, #tpu.memory_space<vmem>>, vector<1x64xf32>
    %4 = vector.broadcast %3 : vector<1x64xf32> to vector<8x64xf32>
    %5 = arith.addf %2, %4 : vector<8x64xf32>
    %cst_5 = arith.constant 0.000000e+00 : f32
    %6 = vector.broadcast %cst_5 : f32 to vector<8x64xf32>
    %7 = arith.maximumf %5, %6 : vector<8x64xf32>
    %c0_6 = arith.constant 0 : index
    %c0_7 = arith.constant 0 : index
    %8 = vector.load %arg4[%c0_6, %c0_7] : memref<64x64xf32, #tpu.memory_space<vmem>>, vector<64x64xf32>
    %cst_8 = arith.constant dense<0.000000e+00> : vector<8x64xf32>
    %9 = tpu.matmul %7, %8, %cst_8 {dimension_numbers = #tpu.dot_dimension_numbers<[1], [0], [0], [1], [0, 0, 1, 1], [], []>} : vector<8x64xf32>, vector<64x64xf32>, vector<8x64xf32> -> vector<8x64xf32>
    %c0_9 = arith.constant 0 : index
    %c0_10 = arith.constant 0 : index
    %10 = vector.load %arg5[%c0_9, %c0_10] : memref<1x64xf32, #tpu.memory_space<vmem>>, vector<1x64xf32>
    %11 = vector.broadcast %10 : vector<1x64xf32> to vector<8x64xf32>
    %12 = arith.addf %9, %11 : vector<8x64xf32>
    %cst_11 = arith.constant 0.000000e+00 : f32
    %13 = vector.broadcast %cst_11 : f32 to vector<8x64xf32>
    %14 = arith.maximumf %12, %13 : vector<8x64xf32>
    %c0_12 = arith.constant 0 : index
    %c0_13 = arith.constant 0 : index
    %15 = vector.load %arg6[%c0_12, %c0_13] : memref<8x64xf32, #tpu.memory_space<vmem>>, vector<8x64xf32>
    tpu.vector_store %arg6[%c0_12, %c0_13], %14 {strides = array<i32>} : memref<8x64xf32, #tpu.memory_space<vmem>>, vector<8x64xf32>,
    return
  }
  func.func @transform_0(%arg0: i32) -> (i32, i32) {
    %c0_i32 = arith.constant 0 : i32
    %c0_i32_0 = arith.constant 0 : i32
    return %arg0, %c0_i32 : i32, i32
  }
  func.func @transform_1(%arg0: i32) -> (i32, i32) {
    %c0_i32 = arith.constant 0 : i32
    %c0_i32_0 = arith.constant 0 : i32
    %c0_i32_1 = arith.constant 0 : i32
    return %c0_i32, %c0_i32_0 : i32, i32
  }
  func.func @transform_2(%arg0: i32) -> (i32, i32) {
    %c0_i32 = arith.constant 0 : i32
    %c0_i32_0 = arith.constant 0 : i32
    %c0_i32_1 = arith.constant 0 : i32
    return %c0_i32, %c0_i32_0 : i32, i32
  }
  func.func @transform_3(%arg0: i32) -> (i32, i32) {
    %c0_i32 = arith.constant 0 : i32
    %c0_i32_0 = arith.constant 0 : i32
    %c0_i32_1 = arith.constant 0 : i32
    return %c0_i32, %c0_i32_0 : i32, i32
  }
  func.func @transform_4(%arg0: i32) -> (i32, i32) {
    %c0_i32 = arith.constant 0 : i32
    %c0_i32_0 = arith.constant 0 : i32
    %c0_i32_1 = arith.constant 0 : i32
    return %c0_i32, %c0_i32_0 : i32, i32
  }
  func.func @transform_5(%arg0: i32) -> (i32, i32) {
    %c0_i32 = arith.constant 0 : i32
    %c0_i32_0 = arith.constant 0 : i32
    return %arg0, %c0_i32 : i32, i32
  }
}

</mosaic_0001>

<llo_original>
// kernel: tpu_custom_call.1
$region0: #{tpu_custom_call.1}
  #allocation0 [shape = 'u32[]', space=smem, size = 0x4, offset = 0x4, fixed_abs, tag = 'smem constant byte address 0x4 - core index']
  #allocation1 [shape = 'u32[72,128]{1,0:T(1,128)}', space=vmem, size = 0x9000, scoped, tag = 'internal scratch']
  %s0 = inlined_call_operand.hbm [shape: f32[8,41], index: 0, kind: input, shape index: {}]
  %s1 = inlined_call_operand.hbm [shape: f32[41,64], index: 1, kind: input, shape index: {}]
  %s2 = inlined_call_operand.vmem [shape: f32[1,64], index: 2, kind: input, shape index: {}]
  %s3 = inlined_call_operand.hbm [shape: f32[64,64], index: 3, kind: input, shape index: {}]
  %s4 = inlined_call_operand.vmem [shape: f32[1,64], index: 4, kind: input, shape index: {}]
  %s5 = inlined_call_operand.hbm [shape: f32[8,64], index: 5, kind: output, shape index: {}]
  %s6 = sld [smem:[#allocation0]]
  $region42: #{tpu_custom_call.1} parent=0
    _
  %s8 = ssub.s32 1, %s6
  %s9 = scalar_select 0, %s8, %s6
  $region1: #{tpu_custom_call.1} parent=0
    #allocation2 [shape = 'u8[4096]{0}', space=vmem, size = 0x1000, scoped, tag = 'input window, operand 0, single buffered']
    #allocation3 [shape = 's32[1]{0}', space=sflag, size = 0x4, scoped, tag = 'scoped memory for tpu_custom_call.1']
    #allocation4 [shape = 's32[1]{0}', space=sflag, size = 0x4, scoped, tag = 'scoped memory for tpu_custom_call.1']
    #allocation5 [shape = 'u8[24576]{0}', space=vmem, size = 0x6000, scoped, tag = 'input window, operand 1, single buffered']
    #allocation6 [shape = 's32[1]{0}', space=sflag, size = 0x4, scoped, tag = 'scoped memory for tpu_custom_call.1']
    #allocation7 [shape = 'u8[32768]{0}', space=vmem, size = 0x8000, scoped, tag = 'input window, operand 3, single buffered']
    #allocation8 [shape = 'u8[4096]{0}', space=vmem, size = 0x1000, scoped, tag = 'output window, operand 0, single buffered']
    %10 = vsyncpa [#allocation3], 0
    %11 = vsyncpa [#allocation6], 0
    %12 = vsyncpa [#allocation4], 0
    // Predicated region
    $region2: #{tpu_custom_call.1} parent=1 // pred_check
      _
    $region3: #{tpu_custom_call.1} parent=1 // pred_check_branch
      %14 = sbr.rel (0) target = $region5
    $region4: #{tpu_custom_call.1} parent=1 // pred_region
      %16 = vsyncadd [#allocation3], 0
      %s18 = sshll.u32 %s0, 4
      %s19 = int_to_ptr.hbm [resolvable:$true] %s18
      %s20 = sshll.u32 [#allocation2], 4
      %s21 = int_to_ptr.vmem [resolvable:$true] %s20
      %23 = dma.hbm_to_vmem [thread:$0]  %s19, 128, %s21, [#allocation3]
    $region5: #{tpu_custom_call.1} parent=1 // pred_fallthru
      _
    // Predicated region
    $region6: #{tpu_custom_call.1} parent=1 // pred_check
      _
    $region7: #{tpu_custom_call.1} parent=1 // pred_check_branch
      %25 = sbr.rel (0) target = $region9
    $region8: #{tpu_custom_call.1} parent=1 // pred_region
      %27 = vsyncadd [#allocation6], 0
      %s28 = sshll.u32 %s1, 4
      %s29 = int_to_ptr.hbm [resolvable:$true] %s28
      %s30 = sshll.u32 [#allocation5], 4
      %s31 = int_to_ptr.vmem [resolvable:$true] %s30
      %36 = dma.hbm_to_vmem [thread:$0]  %s29, 768, %s31, [#allocation6], 128, 128, 8
    $region9: #{tpu_custom_call.1} parent=1 // pred_fallthru
      _
    // Predicated region
    $region10: #{tpu_custom_call.1} parent=1 // pred_check
      _
    $region11: #{tpu_custom_call.1} parent=1 // pred_check_branch
      %38 = sbr.rel (0) target = $region13
    $region12: #{tpu_custom_call.1} parent=1 // pred_region
      _
    $region13: #{tpu_custom_call.1} parent=1 // pred_fallthru
      _
    // Predicated region
    $region14: #{tpu_custom_call.1} parent=1 // pred_check
      _
    $region15: #{tpu_custom_call.1} parent=1 // pred_check_branch
      %40 = sbr.rel (0) target = $region17
    $region16: #{tpu_custom_call.1} parent=1 // pred_region
      %42 = vsyncadd [#allocation6], 0
      %s43 = sshll.u32 %s3, 4
      %s44 = int_to_ptr.hbm [resolvable:$true] %s43
      %s45 = sshll.u32 [#allocation7], 4
      %s46 = int_to_ptr.vmem [resolvable:$true] %s45
      %51 = dma.hbm_to_vmem [thread:$0]  %s44, 1024, %s46, [#allocation6], 128, 128, 8
    $region17: #{tpu_custom_call.1} parent=1 // pred_fallthru
      _
    // Predicated region
    $region18: #{tpu_custom_call.1} parent=1 // pred_check
      _
    $region19: #{tpu_custom_call.1} parent=1 // pred_check_branch
      %53 = sbr.rel (0) target = $region21
    $region20: #{tpu_custom_call.1} parent=1 // pred_region
      _
    $region21: #{tpu_custom_call.1} parent=1 // pred_fallthru
      _
    // Predicated region
    $region22: #{tpu_custom_call.1} parent=1 // pred_check
      _
    $region23: #{tpu_custom_call.1} parent=1 // pred_check_branch
      %55 = sbr.rel (0) target = $region25
    $region24: #{tpu_custom_call.1} parent=1 // pred_region
      %57 = dma.done [#allocation3], 128
    $region25: #{tpu_custom_call.1} parent=1 // pred_fallthru
      _
    // Predicated region
    $region26: #{tpu_custom_call.1} parent=1 // pred_check
      _
    $region27: #{tpu_custom_call.1} parent=1 // pred_check_branch
      %59 = sbr.rel (0) target = $region29
    $region28: #{tpu_custom_call.1} parent=1 // pred_region
      %61 = dma.done [#allocation6], 768
    $region29: #{tpu_custom_call.1} parent=1 // pred_fallthru
      _
    // Predicated region
    $region30: #{tpu_custom_call.1} parent=1 // pred_check
      _
    $region31: #{tpu_custom_call.1} parent=1 // pred_check_branch
      %63 = sbr.rel (0) target = $region33
    $region32: #{tpu_custom_call.1} parent=1 // pred_region
      %65 = dma.done [#allocation6], 1024
    $region33: #{tpu_custom_call.1} parent=1 // pred_fallthru
      _
    %v66 = vld [vmem:[#allocation2] sm:$0xff]
    %v67 = vld [vmem:[#allocation5] sm:$0xff]
    %v68 = vld [vmem:[#allocation5 + $0x8] sm:$0xff]
    %v69 = vld [vmem:[#allocation5 + $0x10] sm:$0xff]
    %v70 = vld [vmem:[#allocation5 + $0x18] sm:$0xff]
    %v71 = vld [vmem:[#allocation5 + $0x20] sm:$0xff]
    %v72 = vld [vmem:[#allocation5 + $0x28] sm:$0x1]
    %v73 = vld [vmem:[%s2] sm:$0x1]
    %v75 = vperm.slane %v73, 0
    %vm77 = vcmask 334848
    %v79 = vsel %vm77, %v66, 0
    %vm81 = vcmask 1040384
    %v83 = vsel %vm81, %v72, 0
    %85 = vmatpush.msra.mxu0 0.0
    %86 = vmatpush.msra.mxu0 0.0
    %87 = vmatpush.msra.mxu0 0.0
    %88 = vmatpush.msra.mxu0 0.0
    %89 = vmatpush.msra.mxu0 0.0
    %90 = vmatpush.msra.mxu0 0.0
    %91 = vmatpush.msra.mxu0 0.0
    %92 = vmatpush.msra.mxu0 0.0
    %93 = vmatpush.msra.mxu0 0.0
    %94 = vmatpush.msra.mxu0 0.0
    %95 = vmatpush.msra.mxu0 %v83
    %96 = vmatpush.msra.mxu0 %v71
    %97 = vmatpush.msra.mxu0 %v70
    %98 = vmatpush.msra.mxu0 %v69
    %99 = vmatpush.msra.mxu0 %v68
    %100 = vmatpush.msra.mxu0 %v67
    %101 = vmatmul.f32.gmra.mxu0 %v79
    %v102 = vpop.f32.mrf.mxu0
    %v103 = vadd.f32 %v75, %v102
    %104 = vdwg.mxu0
    %v105 = vmax.f32 %v103, 0.0
    %v106 = vld [vmem:[#allocation7] sm:$0xff]
    %v107 = vld [vmem:[#allocation7 + $0x8] sm:$0xff]
    %v108 = vld [vmem:[#allocation7 + $0x10] sm:$0xff]
    %v109 = vld [vmem:[#allocation7 + $0x18] sm:$0xff]
    %v110 = vld [vmem:[#allocation7 + $0x20] sm:$0xff]
    %v111 = vld [vmem:[#allocation7 + $0x28] sm:$0xff]
    %v112 = vld [vmem:[#allocation7 + $0x30] sm:$0xff]
    %v113 = vld [vmem:[#allocation7 + $0x38] sm:$0xff]
    %v114 = vld [vmem:[%s4] sm:$0x1]
    %v116 = vperm.slane %v114, 0
    %vm118 = vcmask 523264
    %v120 = vsel %vm118, %v105, 0
    %122 = vmatpush.msra.mxu0 0.0
    %123 = vmatpush.msra.mxu0 0.0
    %124 = vmatpush.msra.mxu0 0.0
    %125 = vmatpush.msra.mxu0 0.0
    %126 = vmatpush.msra.mxu0 0.0
    %127 = vmatpush.msra.mxu0 0.0
    %128 = vmatpush.msra.mxu0 0.0
    %129 = vmatpush.msra.mxu0 0.0
    %130 = vmatpush.msra.mxu0 %v113
    %131 = vmatpush.msra.mxu0 %v112
    %132 = vmatpush.msra.mxu0 %v111
    %133 = vmatpush.msra.mxu0 %v110
    %134 = vmatpush.msra.mxu0 %v109
    %135 = vmatpush.msra.mxu0 %v108
    %136 = vmatpush.msra.mxu0 %v107
    %137 = vmatpush.msra.mxu0 %v106
    %138 = vmatmul.f32.gmra.mxu0 %v120
    %v139 = vpop.f32.mrf.mxu0
    %v140 = vadd.f32 %v116, %v139
    %141 = vdwg.mxu0
    %v142 = vmax.f32 %v140, 0.0
    %143 = vst.msk [vmem:[#allocation8] sm:$0xff] %vm118, %v142
    // Predicated region
    $region34: #{tpu_custom_call.1} parent=1 // pred_check
      _
    $region35: #{tpu_custom_call.1} parent=1 // pred_check_branch
      %145 = sbr.rel (0) target = $region37
    $region36: #{tpu_custom_call.1} parent=1 // pred_region
      %147 = vsyncadd [#allocation4], 0
      %s149 = sshll.u32 [#allocation8], 4
      %s150 = int_to_ptr.vmem [resolvable:$true] %s149
      %s151 = sshll.u32 %s5, 4
      %s152 = int_to_ptr.hbm [resolvable:$true] %s151
      %154 = dma.vmem_to_hbm [thread:$0]  %s150, 128, %s152, [#allocation4]
    $region37: #{tpu_custom_call.1} parent=1 // pred_fallthru
      _
    // Predicated region
    $region38: #{tpu_custom_call.1} parent=1 // pred_check
      _
    $region39: #{tpu_custom_call.1} parent=1 // pred_check_branch
      %156 = sbr.rel (0) target = $region41
    $region40: #{tpu_custom_call.1} parent=1 // pred_region
      %158 = dma.done [#allocation4], 128
    $region41: #{tpu_custom_call.1} parent=1 // pred_fallthru
      _
    %159 = vsyncpa [#allocation3], 1
    %160 = vsyncpa [#allocation6], 1
    %161 = vsyncpa [#allocation4], 1

</llo_original>
